<compile_context>
chip_gen: v5e
topology: v5e:2x2
jax: 0.10.0
libtpu: 0.0.40
codegen_flags: <defaults>
</compile_context>

<pallas_src>
import functools

import jax
import jax.numpy as jnp
from jax import lax
from jax.experimental import pallas as pl
from jax.experimental.pallas import tpu as pltpu


_SUB_ROWS = 256   # inner strip-mine chunk (rows of 128 lanes)
_LANES = 128


def _hue_l1_kernel(real_ref, gen_ref, out_ref, *, tile_rows, sub_rows,
                   rows_total, approx):
    """real_ref / gen_ref: (3, tile_rows, 128) tiles of one image.
    out_ref: (8, 128) lane-dense per-tile partial sums of |hue_real - hue_gen|."""
    t = pl.program_id(1)
    n_sub = tile_rows // sub_rows                 # static; sub_rows | tile_rows
    needs_mask = (rows_total % tile_rows) != 0    # static

    def hue(r, g, b):
        # uint8 quantization (truncation, like .astype(np.uint8) for [0,1] floats).
        # TODO(synk): values > 1.0 / negative values wrap mod 256 under
        # .astype(np.uint8); that path is not reproduced (module assumes [0,1]).
        r = jnp.floor(r * 255.0)
        g = jnp.floor(g * 255.0)
        b = jnp.floor(b * 255.0)
        v = jnp.maximum(jnp.maximum(r, g), b)
        m = jnp.minimum(jnp.minimum(r, g), b)
        d = v - m
        # One reciprocal per pixel on the EUP slot (off the VALU critical slot).
        # d == 0 gives inf/NaN here; the final select masks it (no FP traps on TPU).
        # TODO(synk): OpenCV uses a fixed-point hdiv_table; exact/approx
        # reciprocal + round-half-up can differ from cv2 by <= 1 hue step.
        inv = 30.0 * pl.reciprocal(d, approx=approx)
        num = jnp.where(v == r, g - b, jnp.where(v == g, b - r, r - g))
        base = jnp.where(v == r, 0.0, jnp.where(v == g, 60.0, 120.0))
        h = jnp.floor(base + num * inv + 0.5)     # OpenCV rounds half-up
        h = jnp.where(h < 0.0, h + 180.0, h)      # wrap negatives -> [0, 180)
        return jnp.where(d == 0.0, 0.0, h)

    def chunk_partial(i):
        off = i * sub_rows
        if not isinstance(off, int):
            off = pl.multiple_of(off, sub_rows)
        rs = pl.ds(off, sub_rows)
        rr = real_ref[0, rs, :].astype(jnp.float32)
        rg = real_ref[1, rs, :].astype(jnp.float32)
        rb = real_ref[2, rs, :].astype(jnp.float32)
        gr = gen_ref[0, rs, :].astype(jnp.float32)
        gg = gen_ref[1, rs, :].astype(jnp.float32)
        gb = gen_ref[2, rs, :].astype(jnp.float32)
        absdiff = jnp.abs(hue(rr, rg, rb) - hue(gr, gg, gb))   # (sub_rows, 128)
        if needs_mask:
            # Ragged last row-tile: rows past rows_total hold boundary garbage;
            # select (not multiply) so NaN/Inf garbage is safely discarded.
            valid = rows_total - t * tile_rows - off
            row_id = lax.broadcasted_iota(jnp.int32, (sub_rows, _LANES), 0)
            absdiff = jnp.where(row_id < valid, absdiff, 0.0)
        # Fold sub_rows down to 8 sublanes with plain vector adds (no XLU reduce).
        return jnp.sum(absdiff.reshape(sub_rows // 8, 8, _LANES), axis=0)

    if n_sub == 1:
        out_ref[...] = chunk_partial(0)
    else:
        out_ref[...] = lax.fori_loop(
            0, n_sub, lambda i, acc: acc + chunk_partial(i),
            jnp.zeros((8, _LANES), jnp.float32))


def _choose_tiling(rows, batch, max_rows_per_tile):
    """Pick (tile_rows, sub_rows): tile_rows is a multiple of 8 (and of _SUB_ROWS
    when larger), never exceeds `rows`; sub_rows always divides tile_rows."""
    max_rows = max(_SUB_ROWS, (max_rows_per_tile // _SUB_ROWS) * _SUB_ROWS)
    if rows <= _SUB_ROWS:
        tile_rows = (rows // 8) * 8
    elif rows <= max_rows:
        tile_rows = (rows // _SUB_ROWS) * _SUB_ROWS
    else:
        tile_rows = max_rows
    # v7x megacore: a single-image call should still have >= 2 parallel grid
    # points (only images with <= 8 rows of 128 pixels stay single-tile).
    if batch == 1 and tile_rows == rows and rows >= 16:
        half = (rows + 1) // 2
        if half > _SUB_ROWS:
            tile_rows = ((half + _SUB_ROWS - 1) // _SUB_ROWS) * _SUB_ROWS
        else:
            tile_rows = max(8, ((half + 7) // 8) * 8)
    sub_rows = tile_rows if tile_rows <= _SUB_ROWS else _SUB_ROWS
    return tile_rows, sub_rows


def hue_loss(real_image, generated_image, *, max_rows_per_tile=2048,
             approx_reciprocal=True):
    """real_image, generated_image: (B, 3, H, W) float (f32 or bf16) in [0, 1]."""
    B, C, H, W = real_image.shape
    assert C == 3, "HueLoss expects RGB images"
    assert generated_image.shape == real_image.shape
    P = H * W

    rows = max((P + _LANES - 1) // _LANES, 8)   # lane-dense rows (>= 8 sublanes)
    p_pad = rows * _LANES
    if p_pad == P:
        # Copy-free lane-dense view of the pixel axis (no HBM pad traffic).
        real = real_image.reshape(B, C, rows, _LANES)
        gen = generated_image.reshape(B, C, rows, _LANES)
    else:
        # TODO(synk): only hit when H*W is not a multiple of 128 (or H*W < 1024);
        # this pad copies the inputs once.  Pads are identical zeros in both
        # images so |hue diff| == 0 and the mean (divided by B*P) stays unbiased.
        pad = ((0, 0), (0, 0), (0, p_pad - P))
        real = jnp.pad(real_image.reshape(B, C, P), pad).reshape(B, C, rows, _LANES)
        gen = jnp.pad(generated_image.reshape(B, C, P), pad).reshape(B, C, rows, _LANES)

    tile_rows, sub_rows = _choose_tiling(rows, B, max_rows_per_tile)
    num_tiles = (rows + tile_rows - 1) // tile_rows

    # 2 inputs x 2 pipeline buffers per input (+ headroom): clears v5e's 16 MiB
    # scoped default, stays well under v7x's 64 MiB physical VMEM at 2048 rows.
    tile_bytes = C * tile_rows * _LANES * real.dtype.itemsize
    vmem_limit = int(max(32 * 1024 * 1024, 6 * tile_bytes))

    kernel = functools.partial(
        _hue_l1_kernel, tile_rows=tile_rows, sub_rows=sub_rows,
        rows_total=rows, approx=approx_reciprocal)

    partials = pl.pallas_call(
        kernel,
        out_shape=jax.ShapeDtypeStruct((B, num_tiles, 8, _LANES), jnp.float32),
        grid=(B, num_tiles),
        in_specs=[
            pl.BlockSpec((None, C, tile_rows, _LANES), lambda b, t: (b, 0, t, 0)),
            pl.BlockSpec((None, C, tile_rows, _LANES), lambda b, t: (b, 0, t, 0)),
        ],
        out_specs=pl.BlockSpec((None, None, 8, _LANES), lambda b, t: (b, t, 0, 0)),
        compiler_params=pltpu.CompilerParams(
            dimension_semantics=("parallel", "parallel"),
            vmem_limit_bytes=vmem_limit),
    )(real, gen)

    # Per-image L1 mean then mean over batch == global mean (equal pixel counts);
    # padded/masked pixels contribute exactly 0 to the sum.
    return (jnp.sum(partials) / (B * P)).astype(jnp.float32)


def _opencv_hue_ref(r, g, b):
    r = jnp.floor(r * 255.0)
    g = jnp.floor(g * 255.0)
    b = jnp.floor(b * 255.0)
    v = jnp.maximum(jnp.maximum(r, g), b)
    m = jnp.minimum(jnp.minimum(r, g), b)
    d = v - m
    inv = 30.0 * (1.0 / jnp.where(d == 0.0, 1.0, d))
    num = jnp.where(v == r, g - b, jnp.where(v == g, b - r, r - g))
    base = jnp.where(v == r, 0.0, jnp.where(v == g, 60.0, 120.0))
    h = jnp.floor(base + num * inv + 0.5)
    h = jnp.where(h < 0.0, h + 180.0, h)
    return jnp.where(d == 0.0, 0.0, h)


def hue_loss_ref(real_image, generated_image):
    """Pure-JAX reference (exact divide, no Pallas)."""
    # TODO(synk): validates the Pallas plumbing against the same math, not
    # against cv2.cvtColor itself; keep an offline cv2 golden test.
    real = real_image.astype(jnp.float32)
    gen = generated_image.astype(jnp.float32)
    rh = _opencv_hue_ref(real[:, 0], real[:, 1], real[:, 2])
    gh = _opencv_hue_ref(gen[:, 0], gen[:, 1], gen[:, 2])
    return jnp.mean(jnp.mean(jnp.abs(rh - gh), axis=(-2, -1)))


if __name__ == "__main__":
    key = jax.random.PRNGKey(0)
    k1, k2 = jax.random.split(key)
    # Small, module-consistent shapes: batch=2, channels=3 (RGB), spatial=16x16.
    real = jax.random.uniform(k1, (2, 3, 16, 16), dtype=jnp.float32)
    gen = jax.random.uniform(k2, (2, 3, 16, 16), dtype=jnp.float32)

    ref = jax.block_until_ready(hue_loss_ref(real, gen))

    # Exact-reciprocal path: same math as the reference -> tight check of the
    # tiling / masking / reduction plumbing.
    exact = jax.block_until_ready(
        jax.jit(functools.partial(hue_loss, approx_reciprocal=False))(real, gen))
    assert jnp.isfinite(exact), "exact kernel produced non-finite loss"
    assert jnp.allclose(exact, ref, rtol=1e-3, atol=0.05), (exact, ref)

    # Default fast path (approx EUP reciprocal): allow the documented <=1-hue-step
    # rounding flips on .5 boundaries; still a meaningful check at this scale.
    fast = jax.block_until_ready(jax.jit(hue_loss)(real, gen))
    assert jnp.isfinite(fast), "kernel produced non-finite loss"
    assert jnp.abs(fast - ref) < 1.0, (fast, ref)

    print("KERNEL_OK")
</pallas_src>

<mosaic_0001>
module attributes {stable_mosaic.version = 11 : i64} {
  func.func @_hue_l1_kernel(%arg0: i32, %arg1: i32, %arg2: memref<1x3x8x128xf32, #tpu.memory_space<vmem>>, %arg3: memref<1x3x8x128xf32, #tpu.memory_space<vmem>>, %arg4: memref<1x1x8x128xf32, #tpu.memory_space<vmem>>) attributes {dimension_semantics = [#tpu.dimension_semantics<parallel>, #tpu.dimension_semantics<parallel>], iteration_bounds = array<i64: 2, 1>, scalar_prefetch = 0 : i64, scratch_operands = 0 : i64, tpu.core_type = #tpu.core_type<tc>, window_params = [{transform_indices = @transform_0, window_bounds = array<i64: 1, 3, 8, 128>}, {transform_indices = @transform_1, window_bounds = array<i64: 1, 3, 8, 128>}, {transform_indices = @transform_2, window_bounds = array<i64: 1, 1, 8, 128>}]} {
    %c0 = arith.constant 0 : index
    %c0_0 = arith.constant 0 : index
    %c0_1 = arith.constant 0 : index
    %c0_2 = arith.constant 0 : index
    %0 = vector.load %arg2[%c0, %c0_0, %c0_1, %c0_2] : memref<1x3x8x128xf32, #tpu.memory_space<vmem>>, vector<1x1x8x128xf32>
    %1 = vector.shape_cast %0 : vector<1x1x8x128xf32> to vector<8x128xf32>
    %c0_3 = arith.constant 0 : index
    %c1 = arith.constant 1 : index
    %c0_4 = arith.constant 0 : index
    %c0_5 = arith.constant 0 : index
    %2 = vector.load %arg2[%c0_3, %c1, %c0_4, %c0_5] : memref<1x3x8x128xf32, #tpu.memory_space<vmem>>, vector<1x1x8x128xf32>
    %3 = vector.shape_cast %2 : vector<1x1x8x128xf32> to vector<8x128xf32>
    %c0_6 = arith.constant 0 : index
    %c2 = arith.constant 2 : index
    %c0_7 = arith.constant 0 : index
    %c0_8 = arith.constant 0 : index
    %4 = vector.load %arg2[%c0_6, %c2, %c0_7, %c0_8] : memref<1x3x8x128xf32, #tpu.memory_space<vmem>>, vector<1x1x8x128xf32>
    %5 = vector.shape_cast %4 : vector<1x1x8x128xf32> to vector<8x128xf32>
    %c0_9 = arith.constant 0 : index
    %c0_10 = arith.constant 0 : index
    %c0_11 = arith.constant 0 : index
    %c0_12 = arith.constant 0 : index
    %6 = vector.load %arg3[%c0_9, %c0_10, %c0_11, %c0_12] : memref<1x3x8x128xf32, #tpu.memory_space<vmem>>, vector<1x1x8x128xf32>
    %7 = vector.shape_cast %6 : vector<1x1x8x128xf32> to vector<8x128xf32>
    %c0_13 = arith.constant 0 : index
    %c1_14 = arith.constant 1 : index
    %c0_15 = arith.constant 0 : index
    %c0_16 = arith.constant 0 : index
    %8 = vector.load %arg3[%c0_13, %c1_14, %c0_15, %c0_16] : memref<1x3x8x128xf32, #tpu.memory_space<vmem>>, vector<1x1x8x128xf32>
    %9 = vector.shape_cast %8 : vector<1x1x8x128xf32> to vector<8x128xf32>
    %c0_17 = arith.constant 0 : index
    %c2_18 = arith.constant 2 : index
    %c0_19 = arith.constant 0 : index
    %c0_20 = arith.constant 0 : index
    %10 = vector.load %arg3[%c0_17, %c2_18, %c0_19, %c0_20] : memref<1x3x8x128xf32, #tpu.memory_space<vmem>>, vector<1x1x8x128xf32>
    %11 = vector.shape_cast %10 : vector<1x1x8x128xf32> to vector<8x128xf32>
    %cst = arith.constant 2.550000e+02 : f32
    %12 = vector.broadcast %cst : f32 to vector<8x128xf32>
    %13 = arith.mulf %1, %12 : vector<8x128xf32>
    %14 = math.floor %13 : vector<8x128xf32>
    %cst_21 = arith.constant 2.550000e+02 : f32
    %15 = vector.broadcast %cst_21 : f32 to vector<8x128xf32>
    %16 = arith.mulf %3, %15 : vector<8x128xf32>
    %17 = math.floor %16 : vector<8x128xf32>
    %cst_22 = arith.constant 2.550000e+02 : f32
    %18 = vector.broadcast %cst_22 : f32 to vector<8x128xf32>
    %19 = arith.mulf %5, %18 : vector<8x128xf32>
    %20 = math.floor %19 : vector<8x128xf32>
    %21 = arith.maximumf %14, %17 : vector<8x128xf32>
    %22 = arith.maximumf %21, %20 : vector<8x128xf32>
    %23 = arith.minimumf %14, %17 : vector<8x128xf32>
    %24 = arith.minimumf %23, %20 : vector<8x128xf32>
    %25 = arith.subf %22, %24 : vector<8x128xf32>
    %26 = tpu.reciprocal %25 : vector<8x128xf32> -> vector<8x128xf32>
    %cst_23 = arith.constant 3.000000e+01 : f32
    %27 = vector.broadcast %cst_23 : f32 to vector<8x128xf32>
    %28 = arith.mulf %27, %26 : vector<8x128xf32>
    %29 = arith.cmpf oeq, %22, %14 : vector<8x128xf32>
    %30 = arith.subf %17, %20 : vector<8x128xf32>
    %31 = arith.cmpf oeq, %22, %17 : vector<8x128xf32>
    %32 = arith.subf %20, %14 : vector<8x128xf32>
    %33 = arith.subf %14, %17 : vector<8x128xf32>
    %34 = arith.select %31, %32, %33 : vector<8x128xi1>, vector<8x128xf32>
    %35 = arith.select %29, %30, %34 : vector<8x128xi1>, vector<8x128xf32>
    %36 = arith.cmpf oeq, %22, %14 : vector<8x128xf32>
    %37 = arith.cmpf oeq, %22, %17 : vector<8x128xf32>
    %cst_24 = arith.constant 6.000000e+01 : f32
    %cst_25 = arith.constant 1.200000e+02 : f32
    %38 = vector.broadcast %cst_24 : f32 to vector<8x128xf32>
    %39 = vector.broadcast %cst_25 : f32 to vector<8x128xf32>
    %40 = arith.select %37, %38, %39 : vector<8x128xi1>, vector<8x128xf32>
    %cst_26 = arith.constant 0.000000e+00 : f32
    %41 = vector.broadcast %cst_26 : f32 to vector<8x128xf32>
    %42 = arith.select %36, %41, %40 : vector<8x128xi1>, vector<8x128xf32>
    %43 = arith.mulf %35, %28 : vector<8x128xf32>
    %44 = arith.addf %42, %43 : vector<8x128xf32>
    %cst_27 = arith.constant 5.000000e-01 : f32
    %45 = vector.broadcast %cst_27 : f32 to vector<8x128xf32>
    %46 = arith.addf %44, %45 : vector<8x128xf32>
    %47 = math.floor %46 : vector<8x128xf32>
    %cst_28 = arith.constant 0.000000e+00 : f32
    %48 = vector.broadcast %cst_28 : f32 to vector<8x128xf32>
    %49 = arith.cmpf olt, %47, %48 : vector<8x128xf32>
    %cst_29 = arith.constant 1.800000e+02 : f32
    %50 = vector.broadcast %cst_29 : f32 to vector<8x128xf32>
    %51 = arith.addf %47, %50 : vector<8x128xf32>
    %52 = arith.select %49, %51, %47 : vector<8x128xi1>, vector<8x128xf32>
    %cst_30 = arith.constant 0.000000e+00 : f32
    %53 = vector.broadcast %cst_30 : f32 to vector<8x128xf32>
    %54 = arith.cmpf oeq, %25, %53 : vector<8x128xf32>
    %cst_31 = arith.constant 0.000000e+00 : f32
    %55 = vector.broadcast %cst_31 : f32 to vector<8x128xf32>
    %56 = arith.select %54, %55, %52 : vector<8x128xi1>, vector<8x128xf32>
    %cst_32 = arith.constant 2.550000e+02 : f32
    %57 = vector.broadcast %cst_32 : f32 to vector<8x128xf32>
    %58 = arith.mulf %7, %57 : vector<8x128xf32>
    %59 = math.floor %58 : vector<8x128xf32>
    %cst_33 = arith.constant 2.550000e+02 : f32
    %60 = vector.broadcast %cst_33 : f32 to vector<8x128xf32>
    %61 = arith.mulf %9, %60 : vector<8x128xf32>
    %62 = math.floor %61 : vector<8x128xf32>
    %cst_34 = arith.constant 2.550000e+02 : f32
    %63 = vector.broadcast %cst_34 : f32 to vector<8x128xf32>
    %64 = arith.mulf %11, %63 : vector<8x128xf32>
    %65 = math.floor %64 : vector<8x128xf32>
    %66 = arith.maximumf %59, %62 : vector<8x128xf32>
    %67 = arith.maximumf %66, %65 : vector<8x128xf32>
    %68 = arith.minimumf %59, %62 : vector<8x128xf32>
    %69 = arith.minimumf %68, %65 : vector<8x128xf32>
    %70 = arith.subf %67, %69 : vector<8x128xf32>
    %71 = tpu.reciprocal %70 : vector<8x128xf32> -> vector<8x128xf32>
    %cst_35 = arith.constant 3.000000e+01 : f32
    %72 = vector.broadcast %cst_35 : f32 to vector<8x128xf32>
    %73 = arith.mulf %72, %71 : vector<8x128xf32>
    %74 = arith.cmpf oeq, %67, %59 : vector<8x128xf32>
    %75 = arith.subf %62, %65 : vector<8x128xf32>
    %76 = arith.cmpf oeq, %67, %62 : vector<8x128xf32>
    %77 = arith.subf %65, %59 : vector<8x128xf32>
    %78 = arith.subf %59, %62 : vector<8x128xf32>
    %79 = arith.select %76, %77, %78 : vector<8x128xi1>, vector<8x128xf32>
    %80 = arith.select %74, %75, %79 : vector<8x128xi1>, vector<8x128xf32>
    %81 = arith.cmpf oeq, %67, %59 : vector<8x128xf32>
    %82 = arith.cmpf oeq, %67, %62 : vector<8x128xf32>
    %cst_36 = arith.constant 6.000000e+01 : f32
    %cst_37 = arith.constant 1.200000e+02 : f32
    %83 = vector.broadcast %cst_36 : f32 to vector<8x128xf32>
    %84 = vector.broadcast %cst_37 : f32 to vector<8x128xf32>
    %85 = arith.select %82, %83, %84 : vector<8x128xi1>, vector<8x128xf32>
    %cst_38 = arith.constant 0.000000e+00 : f32
    %86 = vector.broadcast %cst_38 : f32 to vector<8x128xf32>
    %87 = arith.select %81, %86, %85 : vector<8x128xi1>, vector<8x128xf32>
    %88 = arith.mulf %80, %73 : vector<8x128xf32>
    %89 = arith.addf %87, %88 : vector<8x128xf32>
    %cst_39 = arith.constant 5.000000e-01 : f32
    %90 = vector.broadcast %cst_39 : f32 to vector<8x128xf32>
    %91 = arith.addf %89, %90 : vector<8x128xf32>
    %92 = math.floor %91 : vector<8x128xf32>
    %cst_40 = arith.constant 0.000000e+00 : f32
    %93 = vector.broadcast %cst_40 : f32 to vector<8x128xf32>
    %94 = arith.cmpf olt, %92, %93 : vector<8x128xf32>
    %cst_41 = arith.constant 1.800000e+02 : f32
    %95 = vector.broadcast %cst_41 : f32 to vector<8x128xf32>
    %96 = arith.addf %92, %95 : vector<8x128xf32>
    %97 = arith.select %94, %96, %92 : vector<8x128xi1>, vector<8x128xf32>
    %cst_42 = arith.constant 0.000000e+00 : f32
    %98 = vector.broadcast %cst_42 : f32 to vector<8x128xf32>
    %99 = arith.cmpf oeq, %70, %98 : vector<8x128xf32>
    %cst_43 = arith.constant 0.000000e+00 : f32
    %100 = vector.broadcast %cst_43 : f32 to vector<8x128xf32>
    %101 = arith.select %99, %100, %97 : vector<8x128xi1>, vector<8x128xf32>
    %102 = arith.subf %56, %101 : vector<8x128xf32>
    %103 = math.absf %102 : vector<8x128xf32>
    %104 = vector.shape_cast %103 : vector<8x128xf32> to vector<1x8x128xf32>
    %cst_44 = arith.constant dense<0.000000e+00> : vector<8x128xf32>
    %105 = vector.multi_reduction <add>, %104, %cst_44 [0] : vector<1x8x128xf32> to vector<8x128xf32>
    %c0_45 = arith.constant 0 : index
    %c0_46 = arith.constant 0 : index
    %c0_47 = arith.constant 0 : index
    %c0_48 = arith.constant 0 : index
    %106 = vector.load %arg4[%c0_45, %c0_46, %c0_47, %c0_48] : memref<1x1x8x128xf32, #tpu.memory_space<vmem>>, vector<1x1x8x128xf32>
    %107 = vector.shape_cast %106 : vector<1x1x8x128xf32> to vector<8x128xf32>
    %108 = vector.shape_cast %105 : vector<8x128xf32> to vector<1x1x8x128xf32>
    tpu.vector_store %arg4[%c0_45, %c0_46, %c0_47, %c0_48], %108 {strides = array<i32>} : memref<1x1x8x128xf32, #tpu.memory_space<vmem>>, vector<1x1x8x128xf32>,
    return
  }
  func.func @transform_0(%arg0: i32, %arg1: i32) -> (i32, i32, i32, i32) {
    %c0_i32 = arith.constant 0 : i32
    %c0_i32_0 = arith.constant 0 : i32
    %c0_i32_1 = arith.constant 0 : i32
    return %arg0, %c0_i32, %arg1, %c0_i32_0 : i32, i32, i32, i32
  }
  func.func @transform_1(%arg0: i32, %arg1: i32) -> (i32, i32, i32, i32) {
    %c0_i32 = arith.constant 0 : i32
    %c0_i32_0 = arith.constant 0 : i32
    %c0_i32_1 = arith.constant 0 : i32
    return %arg0, %c0_i32, %arg1, %c0_i32_0 : i32, i32, i32, i32
  }
  func.func @transform_2(%arg0: i32, %arg1: i32) -> (i32, i32, i32, i32) {
    %c0_i32 = arith.constant 0 : i32
    %c0_i32_0 = arith.constant 0 : i32
    %c0_i32_1 = arith.constant 0 : i32
    return %arg0, %arg1, %c0_i32, %c0_i32_0 : i32, i32, i32, i32
  }
}

</mosaic_0001>

<llo_original>
// kernel: hue_loss.1
$region0: #{hue_loss.1}
  #allocation0 [shape = 'u32[]', space=smem, size = 0x4, offset = 0x4, fixed_abs, tag = 'smem constant byte address 0x4 - core index']
  #allocation1 [shape = 'u32[72,128]{1,0:T(1,128)}', space=vmem, size = 0x9000, scoped, tag = 'internal scratch']
  %s0 = inlined_call_operand.vmem [shape: f32[2,3,8,128], index: 0, kind: input, shape index: {}]
  %s1 = inlined_call_operand.vmem [shape: f32[2,3,8,128], index: 1, kind: input, shape index: {}]
  %s2 = inlined_call_operand.vmem [shape: f32[2,1,8,128], index: 2, kind: output, shape index: {}]
  %s3 = sld [smem:[#allocation0]]
  $region41: #{hue_loss.1} parent=0
    _
  %s5 = ssub.s32 1, %s3
  %s6 = scalar_select 0, %s5, %s3
  loop: start=0, step=1, limit=4
  $region2: #{hue_loss.1} parent=0 // loop_pre_header
    _
  $region3: #{hue_loss.1} parent=0 // loop_header
    %s8 = sphi 0, %s12
    %p9 = scmp.ge.s32.totalorder %s8, 4
    %s15 = sphi 0, %s27
    %s16 = sphi 0, %s23
    %s17 = sphi 0, %s15
    %s18 = sphi 0, %s16
    %s19 = sphi 0, %s17
    %s20 = sphi 0, %s18
    %s32 = sphi 0, %s34
    %s35 = sphi 0, %s32
    %s36 = sphi 0, %s35
    %s52 = sphi 0, %s36
    %s60 = sphi 0, %s62
    %s63 = sphi 0, %s60
    %s64 = sphi 0, %s63
    %s80 = sphi 0, %s64
    %s88 = sphi 0, %s90
    %s91 = sphi 0, %s88
    %s92 = sphi 0, %s91
    %s108 = sphi 0, %s92
  $region4: #{hue_loss.1} parent=0 // loop_header_branch
    %11 = sbr.rel (%p9) target = $region8
  $region5: #{hue_loss.1} parent=0 // loop_body
    %s13 = ssub.s32 %s8, 1
    %s14 = ssub.s32 %s8, 2
    %s21 = sadd.s32 1, %s16
    %p22 = scmp.ge.s32.totalorder %s21, 1
    %s23 = scalar_select %p22, 0, %s21
    %s24 = sadd.s32 1, %s15
    %s25 = scalar_select %p22, %s24, %s15
    %p26 = scmp.ge.s32.totalorder %s25, 2
    %s27 = scalar_select %p26, 0, %s25
    %s28 = ssub.s32 %s15, %s27
    %s29 = ssub.s32 %s16, %s23
    %s30 = sor.u32 %s28, %s29
    %p31 = scmp.eq.s32.totalorder %s30, 0
    %s33 = sadd.s32 %s32, 1
    %s34 = scalar_select %p31, %s32, %s33
    %p37 = pneg %p31
    %p38 = scmp.eq.s32.totalorder %s8, 1
    %p39 = por %p37, %p38
    %p40 = scmp.ne.s32.totalorder %s32, %s35
    %p41 = scmp.eq.s32.totalorder %s8, 0
    %p42 = por %p40, %p41
    %p43 = scmp.ne.s32.totalorder %s32, %s35
    %p44 = scmp.eq.s32.totalorder %s13, 1
    %p45 = por %p43, %p44
    %p46 = scmp.ne.s32.totalorder %s35, %s36
    %p47 = scmp.eq.s32.totalorder %s13, 0
    %p48 = por %p46, %p47
    %p49 = scmp.ne.s32.totalorder %s35, %s36
    %p50 = scmp.eq.s32.totalorder %s14, 1
    %p51 = por %p49, %p50
    %p53 = scmp.ne.s32.totalorder %s36, %s52
    %p54 = scmp.eq.s32.totalorder %s14, 0
    %p55 = por %p53, %p54
    %s56 = ssub.s32 %s15, %s27
    %s57 = ssub.s32 %s16, %s23
    %s58 = sor.u32 %s56, %s57
    %p59 = scmp.eq.s32.totalorder %s58, 0
    %s61 = sadd.s32 %s60, 1
    %s62 = scalar_select %p59, %s60, %s61
    %p65 = pneg %p59
    %p66 = scmp.eq.s32.totalorder %s8, 1
    %p67 = por %p65, %p66
    %p68 = scmp.ne.s32.totalorder %s60, %s63
    %p69 = scmp.eq.s32.totalorder %s8, 0
    %p70 = por %p68, %p69
    %p71 = scmp.ne.s32.totalorder %s60, %s63
    %p72 = scmp.eq.s32.totalorder %s13, 1
    %p73 = por %p71, %p72
    %p74 = scmp.ne.s32.totalorder %s63, %s64
    %p75 = scmp.eq.s32.totalorder %s13, 0
    %p76 = por %p74, %p75
    %p77 = scmp.ne.s32.totalorder %s63, %s64
    %p78 = scmp.eq.s32.totalorder %s14, 1
    %p79 = por %p77, %p78
    %p81 = scmp.ne.s32.totalorder %s64, %s80
    %p82 = scmp.eq.s32.totalorder %s14, 0
    %p83 = por %p81, %p82
    %s84 = ssub.s32 %s15, %s27
    %s85 = ssub.s32 %s16, %s23
    %s86 = sor.u32 %s84, %s85
    %p87 = scmp.eq.s32.totalorder %s86, 0
    %s89 = sadd.s32 %s88, 1
    %s90 = scalar_select %p87, %s88, %s89
    %p93 = pneg %p87
    %p94 = scmp.eq.s32.totalorder %s8, 1
    %p95 = por %p93, %p94
    %p96 = scmp.ne.s32.totalorder %s88, %s91
    %p97 = scmp.eq.s32.totalorder %s8, 0
    %p98 = por %p96, %p97
    %p99 = scmp.ne.s32.totalorder %s88, %s91
    %p100 = scmp.eq.s32.totalorder %s13, 1
    %p101 = por %p99, %p100
    %p102 = scmp.ne.s32.totalorder %s91, %s92
    %p103 = scmp.eq.s32.totalorder %s13, 0
    %p104 = por %p102, %p103
    %p105 = scmp.ne.s32.totalorder %s91, %s92
    %p106 = scmp.eq.s32.totalorder %s14, 1
    %p107 = por %p105, %p106
    %p109 = scmp.ne.s32.totalorder %s92, %s108
    %p110 = scmp.eq.s32.totalorder %s14, 0
    %p111 = por %p109, %p110
    %p112 = scmp.le.s32.totalorder 1, %s8
    %p113 = scmp.lt.s32.totalorder %s8, 3
    %p114 = pnand %p112, %p113
    %p115 = pneg %p114
    // Predicated region
    $region9: #{hue_loss.1} parent=5 // pred_check
      _
    $region10: #{hue_loss.1} parent=5 // pred_check_branch
      %117 = sbr.rel (%p114) target = $region12
    $region11: #{hue_loss.1} parent=5 // pred_region
      %s118 = ssub.s32 %s8, 1
    $region12: #{hue_loss.1} parent=5 // pred_fallthru
      _
    %p119 = scmp.lt.s32.totalorder %s8, 2
    // Predicated region
    $region13: #{hue_loss.1} parent=5 // pred_check
      %p120 = pneg %p119
    $region14: #{hue_loss.1} parent=5 // pred_check_branch
      %122 = sbr.rel (%p120) target = $region16
    $region15: #{hue_loss.1} parent=5 // pred_region
      // Predicated region
      $region17: #{hue_loss.1} parent=15 // pred_check
        %p123 = pneg %p42
      $region18: #{hue_loss.1} parent=15 // pred_check_branch
        %125 = sbr.rel (%p123) target = $region20
      $region19: #{hue_loss.1} parent=15 // pred_region
        %p126 = scmp.lt.s32.totalorder %s15, 1
        %s127 = scalar_select %p126, %s15, 1
        %p128 = scmp.lt.s32.totalorder %s16, 0
        %s129 = scalar_select %p128, %s16, 0
        %s130 = smul.addr %s127, 3
        %s131 = sadd.s32 %s129, %s130
        %s132 = smul.addr %s131, 8
        %s133 = scalar_lea.vmem %s0, %s132
      $region20: #{hue_loss.1} parent=15 // pred_fallthru
        _
      // Predicated region
      $region21: #{hue_loss.1} parent=15 // pred_check
        %p134 = pneg %p70
      $region22: #{hue_loss.1} parent=15 // pred_check_branch
        %136 = sbr.rel (%p134) target = $region24
      $region23: #{hue_loss.1} parent=15 // pred_region
        %p137 = scmp.lt.s32.totalorder %s15, 1
        %s138 = scalar_select %p137, %s15, 1
        %p139 = scmp.lt.s32.totalorder %s16, 0
        %s140 = scalar_select %p139, %s16, 0
        %s141 = smul.addr %s138, 3
        %s142 = sadd.s32 %s140, %s141
        %s143 = smul.addr %s142, 8
        %s144 = scalar_lea.vmem %s1, %s143
      $region24: #{hue_loss.1} parent=15 // pred_fallthru
        _
    $region16: #{hue_loss.1} parent=5 // pred_fallthru
      _
    %p145 = scmp.le.s32.totalorder 1, %s8
    %p146 = scmp.lt.s32.totalorder %s8, 3
    %p147 = pnand %p145, %p146
    %p148 = pneg %p147
    // Predicated region
    $region25: #{hue_loss.1} parent=5 // pred_check
      _
    $region26: #{hue_loss.1} parent=5 // pred_check_branch
      %150 = sbr.rel (%p147) target = $region28
    $region27: #{hue_loss.1} parent=5 // pred_region
      %s151 = ssub.s32 %s8, 1
      %p152 = scmp.lt.s32.totalorder %s17, 1
      %s153 = scalar_select %p152, %s17, 1
      %p154 = scmp.lt.s32.totalorder %s18, 0
      %s155 = scalar_select %p154, %s18, 0
      %s156 = smul.addr %s153, 3
      %s157 = sadd.s32 %s155, %s156
      %s158 = smul.addr %s157, 8
      %s159 = scalar_lea.vmem %s0, %s158
      %p160 = pneg %p48
      %p161 = pneg %p45
      %p162 = scmp.lt.s32.totalorder %s17, 1
      %s163 = scalar_select %p162, %s17, 1
      %p164 = scmp.lt.s32.totalorder %s18, 0
      %s165 = scalar_select %p164, %s18, 0
      %s166 = smul.addr %s163, 3
      %s167 = sadd.s32 %s165, %s166
      %s168 = smul.addr %s167, 8
      %s169 = scalar_lea.vmem %s1, %s168
      %p170 = pneg %p76
      %p171 = pneg %p73
      %p172 = pneg %p104
      %p173 = pneg %p101
      %p174 = scmp.lt.s32.totalorder %s17, 1
      %s175 = scalar_select %p174, %s17, 1
      %p176 = scmp.lt.s32.totalorder %s18, 0
      %s177 = scalar_select %p176, %s18, 0
      %s178 = sadd.s32 %s177, %s175
      %s179 = smul.addr %s178, 8
      %s180 = scalar_lea.vmem %s2, %s179
      %p181 = scmp.lt.s32.totalorder %s17, 1
      %s182 = scalar_select %p181, %s17, 1
      %p183 = scmp.lt.s32.totalorder %s18, 0
      %s184 = scalar_select %p183, %s18, 0
      %s185 = smul.addr %s182, 3
      %s186 = sadd.s32 %s184, %s185
      %s187 = smul.addr %s186, 8
      %s188 = scalar_lea.vmem %s0, %s187
      %p189 = scmp.lt.s32.totalorder %s17, 1
      %s190 = scalar_select %p189, %s17, 1
      %p191 = scmp.lt.s32.totalorder %s18, 0
      %s192 = scalar_select %p191, %s18, 0
      %s193 = smul.addr %s190, 3
      %s194 = sadd.s32 %s192, %s193
      %s195 = smul.addr %s194, 8
      %s196 = scalar_lea.vmem %s1, %s195
      %p197 = scmp.lt.s32.totalorder %s17, 1
      %s198 = scalar_select %p197, %s17, 1
      %p199 = scmp.lt.s32.totalorder %s18, 0
      %s200 = scalar_select %p199, %s18, 0
      %s201 = sadd.s32 %s200, %s198
      %s202 = smul.addr %s201, 8
      %s203 = scalar_lea.vmem %s2, %s202
      %v204 = vld [vmem:[%s188] sm:$0xff]
      %s205 = scalar_lea.vmem %s188, 8
      %v206 = vld [vmem:[%s205] sm:$0xff]
      %s207 = scalar_lea.vmem %s188, 16
      %v208 = vld [vmem:[%s207] sm:$0xff]
      %v209 = vld [vmem:[%s196] sm:$0xff]
      %s210 = scalar_lea.vmem %s196, 8
      %v211 = vld [vmem:[%s210] sm:$0xff]
      %s212 = scalar_lea.vmem %s196, 16
      %v213 = vld [vmem:[%s212] sm:$0xff]
      %v214 = vmul.f32 %v204, 255.0
      %v215 = vfloor.f32 %v214
      %v216 = vmul.f32 %v206, 255.0
      %v217 = vfloor.f32 %v216
      %v218 = vmul.f32 %v208, 255.0
      %v219 = vfloor.f32 %v218
      %v220 = vmax.f32 %v215, %v217
      %v221 = vmax.f32 %v220, %v219
      %v222 = vmin.f32 %v215, %v217
      %v223 = vmin.f32 %v222, %v219
      %v224 = vsub.f32 %v221, %v223
      %v225 = vrcp.pop %v224
      %v226 = vmul.f32 %v224, %v225
      %v227 = vsub.f32 1.0, %v226
      %v228 = vmul.f32 %v225, %v227
      %v229 = vadd.f32 %v225, %v228
      %vm230 = vweird.f32 %v224
      %vm231 = vweird.f32 %v225
      %vm232 = vmor %vm230, %vm231
      %v233 = vsel %vm232, %v225, %v229
      %v234 = vand.u32 2147483647, %v224
      %vm235 = vcmp.eq.f32.partialorder %v234, 8.507059e+37
      %v236 = vand.u32 %v224, 2147483648
      %v237 = vor.u32 1.1754944e-38, %v236
      %v238 = vsel %vm235, %v237, %v233
      %v239 = vmul.f32 %v238, 30.0
      %vm240 = vcmp.eq.f32.partialorder %v221, %v215
      %v241 = vsub.f32 %v217, %v219
      %vm242 = vcmp.eq.f32.partialorder %v221, %v217
      %v243 = vsub.f32 %v219, %v215
      %v244 = vsub.f32 %v215, %v217
      %v245 = vsel %vm242, %v243, %v244
      %v246 = vsel %vm240, %v241, %v245
      %v247 = vsel %vm242, 60.0, 120.0
      %v248 = vsel %vm240, 0.0, %v247
      %v249 = vmul.f32 %v246, %v239
      %v250 = vadd.f32 %v248, %v249
      %v251 = vadd.f32 %v250, 0.5
      %v252 = vfloor.f32 %v251
      %vm253 = vcmp.lt.f32.partialorder %v252, 0.0
      %v254 = vadd.f32 %v252, 180.0
      %v255 = vsel %vm253, %v254, %v252
      %vm256 = vcmp.eq.f32.partialorder %v224, 0.0
      %v257 = vsel %vm256, 0.0, %v255
      %v258 = vmul.f32 %v209, 255.0
      %v259 = vfloor.f32 %v258
      %v260 = vmul.f32 %v211, 255.0
      %v261 = vfloor.f32 %v260
      %v262 = vmul.f32 %v213, 255.0
      %v263 = vfloor.f32 %v262
      %v264 = vmax.f32 %v259, %v261
      %v265 = vmax.f32 %v264, %v263
      %v266 = vmin.f32 %v259, %v261
      %v267 = vmin.f32 %v266, %v263
      %v268 = vsub.f32 %v265, %v267
      %v269 = vrcp.pop %v268
      %v270 = vmul.f32 %v268, %v269
      %v271 = vsub.f32 1.0, %v270
      %v272 = vmul.f32 %v269, %v271
      %v273 = vadd.f32 %v269, %v272
      %vm274 = vweird.f32 %v268
      %vm275 = vweird.f32 %v269
      %vm276 = vmor %vm274, %vm275
      %v277 = vsel %vm276, %v269, %v273
      %v278 = vand.u32 2147483647, %v268
      %vm279 = vcmp.eq.f32.partialorder %v278, 8.507059e+37
      %v280 = vand.u32 %v268, 2147483648
      %v281 = vor.u32 1.1754944e-38, %v280
      %v282 = vsel %vm279, %v281, %v277
      %v283 = vmul.f32 %v282, 30.0
      %vm284 = vcmp.eq.f32.partialorder %v265, %v259
      %v285 = vsub.f32 %v261, %v263
      %vm286 = vcmp.eq.f32.partialorder %v265, %v261
      %v287 = vsub.f32 %v263, %v259
      %v288 = vsub.f32 %v259, %v261
      %v289 = vsel %vm286, %v287, %v288
      %v290 = vsel %vm284, %v285, %v289
      %v291 = vsel %vm286, 60.0, 120.0
      %v292 = vsel %vm284, 0.0, %v291
      %v293 = vmul.f32 %v290, %v283
      %v294 = vadd.f32 %v292, %v293
      %v295 = vadd.f32 %v294, 0.5
      %v296 = vfloor.f32 %v295
      %vm297 = vcmp.lt.f32.partialorder %v296, 0.0
      %v298 = vadd.f32 %v296, 180.0
      %v299 = vsel %vm297, %v298, %v296
      %vm300 = vcmp.eq.f32.partialorder %v268, 0.0
      %v301 = vsel %vm300, 0.0, %v299
      %v302 = vsub.f32 %v257, %v301
      %v303 = vand.u32 2147483647, %v302
      %v304 = vadd.f32 %v303, 0.0
      %305 = vst [vmem:[%s203] sm:$0xff] %v304
      %p306 = scmp.lt.s32.totalorder %s17, 1
      %s307 = scalar_select %p306, %s17, 1
      %p308 = scmp.lt.s32.totalorder %s18, 0
      %s309 = scalar_select %p308, %s18, 0
      %s310 = sadd.s32 %s309, %s307
      %s311 = smul.addr %s310, 8
      %s312 = scalar_lea.vmem %s2, %s311
      // Predicated region
      $region29: #{hue_loss.1} parent=27 // pred_check
        %p313 = pneg %p101
      $region30: #{hue_loss.1} parent=27 // pred_check_branch
        %315 = sbr.rel (%p313) target = $region32
      $region31: #{hue_loss.1} parent=27 // pred_region
        _
      $region32: #{hue_loss.1} parent=27 // pred_fallthru
        _
    $region28: #{hue_loss.1} parent=5 // pred_fallthru
      _
    %p316 = scmp.le.s32.totalorder 2, %s8
    // Predicated region
    $region33: #{hue_loss.1} parent=5 // pred_check
      %p317 = pneg %p316
    $region34: #{hue_loss.1} parent=5 // pred_check_branch
      %319 = sbr.rel (%p317) target = $region36
    $region35: #{hue_loss.1} parent=5 // pred_region
      %s320 = ssub.s32 %s8, 2
      // Predicated region
      $region37: #{hue_loss.1} parent=35 // pred_check
        %p321 = pneg %p107
      $region38: #{hue_loss.1} parent=35 // pred_check_branch
        %323 = sbr.rel (%p321) target = $region40
      $region39: #{hue_loss.1} parent=35 // pred_region
        %p324 = scmp.lt.s32.totalorder %s19, 1
        %s325 = scalar_select %p324, %s19, 1
        %p326 = scmp.lt.s32.totalorder %s20, 0
        %s327 = scalar_select %p326, %s20, 0
        %s328 = sadd.s32 %s327, %s325
        %s329 = smul.addr %s328, 8
        %s330 = scalar_lea.vmem %s2, %s329
      $region40: #{hue_loss.1} parent=35 // pred_fallthru
        _
    $region36: #{hue_loss.1} parent=5 // pred_fallthru
      _
  $region6: #{hue_loss.1} parent=0 // loop_footer
    %s12 = sadd.s32 1, %s8
  $region7: #{hue_loss.1} parent=0 // loop_footer_branch
    %7 = sbr.rel target = $region3
  $region8: #{hue_loss.1} parent=0 // loop_exit
    _

</llo_original>
